<compile_context>
chip_gen: v6e
topology: v6e:2x2x1
jax: 0.10.0
libtpu: 0.0.40
codegen_flags: <defaults>
</compile_context>

<pallas_src>
import functools
import math

import jax
import jax.numpy as jnp
from jax.experimental import pallas as pl
from jax.experimental.pallas import tpu as pltpu

D_MODEL = 32
MAX_LEN = 600
DROPOUT_P = 0.1


def make_pe_table(d_model: int, max_len: int) -> jnp.ndarray:
    """Sinusoidal table, exactly mirroring the PyTorch __init__ (f32)."""
    position = jnp.arange(max_len, dtype=jnp.float32)[:, None]
    div_term = jnp.exp(
        jnp.arange(0, d_model, 2, dtype=jnp.float32) * (-math.log(10000.0) / d_model)
    )
    angles = position * div_term
    pe = jnp.zeros((max_len, d_model), dtype=jnp.float32)
    pe = pe.at[:, 0::2].set(jnp.sin(angles))
    pe = pe.at[:, 1::2].set(jnp.cos(angles))
    return pe


# ---------------------------------------------------------------------------
# Kernels.  x/out blocks are (Ts, B*D); pe_ref is a small (Ts, W) block that
# is reused for every W-wide lane chunk of the x/out block (compile-time
# Python loop -> whole-vreg adds, no cross-lane concatenate).
# ---------------------------------------------------------------------------

def _pe_add_kernel(x_ref, pe_ref, o_ref, *, n_chunks, chunk):
    pe = pe_ref[...].astype(jnp.float32)
    for c in range(n_chunks):
        lo, hi = c * chunk, (c + 1) * chunk
        x = x_ref[:, lo:hi].astype(jnp.float32)
        o_ref[:, lo:hi] = (x + pe).astype(o_ref.dtype)


def _pe_add_dropout_rng_kernel(seed_ref, x_ref, pe_ref, o_ref, *,
                               n_chunks, chunk, keep_threshold, inv_keep):
    # Fold the grid step into the seed so every block draws an independent
    # stream; compare raw int32 bits against a signed threshold (P(keep)=1-p).
    pltpu.prng_seed(seed_ref[0], pl.program_id(0))
    pe = pe_ref[...].astype(jnp.float32)
    rows = x_ref.shape[0]
    for c in range(n_chunks):
        lo, hi = c * chunk, (c + 1) * chunk
        x = x_ref[:, lo:hi].astype(jnp.float32)
        bits = pltpu.prng_random_bits((rows, chunk))
        if bits.dtype != jnp.int32:
            bits = pltpu.bitcast(bits, jnp.int32)
        scale = jnp.where(bits >= jnp.int32(keep_threshold),
                          jnp.float32(inv_keep), jnp.float32(0.0))
        o_ref[:, lo:hi] = ((x + pe) * scale).astype(o_ref.dtype)


def _pe_add_dropout_mask_kernel(x_ref, pe_ref, m_ref, o_ref, *,
                                n_chunks, chunk, inv_keep):
    pe = pe_ref[...].astype(jnp.float32)
    for c in range(n_chunks):
        lo, hi = c * chunk, (c + 1) * chunk
        x = x_ref[:, lo:hi].astype(jnp.float32)
        keep = m_ref[:, lo:hi] != 0
        scale = jnp.where(keep, jnp.float32(inv_keep), jnp.float32(0.0))
        o_ref[:, lo:hi] = ((x + pe) * scale).astype(o_ref.dtype)


def _choose_seq_tile(S, row_bytes, *, sublane=8, target_bytes=2 << 20):
    """Rows per block: ~target_bytes per stream, sublane-aligned, and capped so
    the grid has at least 2 steps when possible (v7x has 2 TensorCores)."""
    rows = max(sublane, (target_bytes // max(1, row_bytes)) // sublane * sublane)
    half = -(-S // 2)                      # cdiv(S, 2)
    half = -(-half // sublane) * sublane   # round up to sublane multiple
    if half < S:
        rows = min(rows, half)
    return S if rows >= S else rows


def positional_encoding(x: jnp.ndarray,
                        pe_table: jnp.ndarray,
                        *,
                        p: float = DROPOUT_P,
                        rng_key=None,
                        train: bool = True) -> jnp.ndarray:
    """x: (S, B, D).  Returns dropout(x + pe[:S]) with the same shape/dtype."""
    S, B, D = x.shape
    BD = B * D

    x2 = x.reshape(S, BD)  # free row-major reshape -> lane-major slab

    # PE chunk width: 128 lanes when the slab is lane-dense, else D.
    if BD % 128 == 0 and 128 % D == 0:
        W = 128
    else:
        # TODO(synk): when B*D is not a multiple of 128 (e.g. B=2, D=32 -> 64
        # lanes) stores are partially masked; padding B or folding rows into
        # lanes would require a full-size PE stream, which costs more than it
        # saves at these small shapes.
        W = D
    n_chunks = BD // W
    pe_lane = jnp.tile(pe_table[:S].astype(jnp.float32), (1, W // D))  # (S, W)

    itemsize = jnp.dtype(x.dtype).itemsize
    sublane = 8 * max(1, 4 // itemsize)          # 8 (f32) / 16 (bf16) / 32 (i8)
    Ts = _choose_seq_tile(S, BD * itemsize, sublane=sublane)
    grid = (pl.cdiv(S, Ts),)

    x_spec = pl.BlockSpec((Ts, BD), lambda i: (i, 0))
    pe_spec = pl.BlockSpec((Ts, W), lambda i: (i, 0))
    out_spec = pl.BlockSpec((Ts, BD), lambda i: (i, 0))
    out_shape = jax.ShapeDtypeStruct((S, BD), x.dtype)
    cparams = pltpu.CompilerParams(
        dimension_semantics=("parallel",),       # v7x: 2 TCs split the seq axis
        vmem_limit_bytes=32 * 1024 * 1024,
    )

    if not train or p == 0.0:
        out = pl.pallas_call(
            functools.partial(_pe_add_kernel, n_chunks=n_chunks, chunk=W),
            out_shape=out_shape,
            grid=grid,
            in_specs=[x_spec, pe_spec],
            out_specs=out_spec,
            compiler_params=cparams,
        )(x2, pe_lane)
        return out.reshape(S, B, D)

    if not (0.0 < p < 1.0):
        raise ValueError("dropout p must be in (0, 1) in training mode")
    if rng_key is None:
        raise ValueError("training-mode dropout requires an explicit rng_key")

    inv_keep = 1.0 / (1.0 - p)

    # Preferred path: in-kernel PRNG dropout (2 HBM passes: read x, write out).
    try:
        seed = jax.random.randint(rng_key, (1,), minval=0,
                                  maxval=jnp.iinfo(jnp.int32).max,
                                  dtype=jnp.int32)
        thr = int(round(p * (2.0 ** 32))) - 2 ** 31
        thr = max(-(2 ** 31), min(2 ** 31 - 1, thr))
        out = pl.pallas_call(
            functools.partial(_pe_add_dropout_rng_kernel, n_chunks=n_chunks,
                              chunk=W, keep_threshold=thr, inv_keep=inv_keep),
            out_shape=out_shape,
            grid=grid,
            in_specs=[pl.BlockSpec(memory_space=pltpu.MemorySpace.SMEM),
                      x_spec, pe_spec],
            out_specs=out_spec,
            compiler_params=cparams,
        )(seed, x2, pe_lane)
        return jax.block_until_ready(out).reshape(S, B, D)
    except Exception:
        # TODO(synk): pltpu.prng_seed / prng_random_bits unavailable in this
        # execution mode (e.g. CPU interpret testing); fall back to a
        # precomputed uint8 keep-mask stream expanded to {0, 1/(1-p)} in-kernel.
        pass

    keep_u8 = jax.random.bernoulli(rng_key, 1.0 - p, (S, BD)).astype(jnp.uint8)
    mask_spec = pl.BlockSpec((Ts, BD), lambda i: (i, 0))
    out = pl.pallas_call(
        functools.partial(_pe_add_dropout_mask_kernel, n_chunks=n_chunks,
                          chunk=W, inv_keep=inv_keep),
        out_shape=out_shape,
        grid=grid,
        in_specs=[x_spec, pe_spec, mask_spec],
        out_specs=out_spec,
        compiler_params=cparams,
    )(x2, pe_lane, keep_u8)
    return out.reshape(S, B, D)


if __name__ == "__main__":
    key = jax.random.PRNGKey(0)
    k_x, k_drop = jax.random.split(key)

    S, B, D = 8, 2, D_MODEL
    x = jax.random.normal(k_x, (S, B, D), dtype=jnp.float32)
    pe_table = make_pe_table(D_MODEL, MAX_LEN)

    # Eval mode (dropout disabled): must match the reference exactly.
    out_eval = jax.block_until_ready(
        positional_encoding(x, pe_table, p=DROPOUT_P, train=False))
    ref = x + pe_table[:S][:, None, :]
    assert out_eval.shape == (S, B, D)
    assert jnp.allclose(out_eval, ref, atol=1e-6), "eval-mode mismatch vs reference"

    # Train mode (dropout p=0.1): every element is either 0 or scaled reference.
    out_train = jax.block_until_ready(
        positional_encoding(x, pe_table, p=DROPOUT_P, rng_key=k_drop, train=True))
    assert out_train.shape == (S, B, D)
    scaled = ref / (1.0 - DROPOUT_P)
    ok = jnp.all((out_train == 0) | (jnp.abs(out_train - scaled) < 1e-4))
    assert bool(ok), "train-mode elements must be 0 or scaled (x + pe)"

    print("KERNEL_OK")
</pallas_src>

<mosaic_0001>
module attributes {stable_mosaic.version = 11 : i64} {
  func.func @_pe_add_kernel(%arg0: i32, %arg1: memref<8x64xf32, #tpu.memory_space<vmem>>, %arg2: memref<8x32xf32, #tpu.memory_space<vmem>>, %arg3: memref<8x64xf32, #tpu.memory_space<vmem>>) attributes {dimension_semantics = [#tpu.dimension_semantics<parallel>], iteration_bounds = array<i64: 1>, scalar_prefetch = 0 : i64, scratch_operands = 0 : i64, tpu.core_type = #tpu.core_type<tc>, window_params = [{transform_indices = @transform_0, window_bounds = array<i64: 8, 64>}, {transform_indices = @transform_1, window_bounds = array<i64: 8, 32>}, {transform_indices = @transform_2, window_bounds = array<i64: 8, 64>}]} {
    %c0 = arith.constant 0 : index
    %c0_0 = arith.constant 0 : index
    %0 = vector.load %arg2[%c0, %c0_0] : memref<8x32xf32, #tpu.memory_space<vmem>>, vector<8x32xf32>
    %c0_1 = arith.constant 0 : index
    %c0_2 = arith.constant 0 : index
    %1 = vector.load %arg1[%c0_1, %c0_2] : memref<8x64xf32, #tpu.memory_space<vmem>>, vector<8x32xf32>
    %2 = arith.addf %1, %0 : vector<8x32xf32>
    %c0_3 = arith.constant 0 : index
    %c0_4 = arith.constant 0 : index
    %3 = vector.load %arg3[%c0_3, %c0_4] : memref<8x64xf32, #tpu.memory_space<vmem>>, vector<8x32xf32>
    tpu.vector_store %arg3[%c0_3, %c0_4], %2 {strides = array<i32>} : memref<8x64xf32, #tpu.memory_space<vmem>>, vector<8x32xf32>,
    %c0_5 = arith.constant 0 : index
    %c32 = arith.constant 32 : index
    %4 = vector.load %arg1[%c0_5, %c32] : memref<8x64xf32, #tpu.memory_space<vmem>>, vector<8x32xf32>
    %5 = arith.addf %4, %0 : vector<8x32xf32>
    %c0_6 = arith.constant 0 : index
    %c32_7 = arith.constant 32 : index
    %6 = vector.load %arg3[%c0_6, %c32_7] : memref<8x64xf32, #tpu.memory_space<vmem>>, vector<8x32xf32>
    tpu.vector_store %arg3[%c0_6, %c32_7], %5 {strides = array<i32>} : memref<8x64xf32, #tpu.memory_space<vmem>>, vector<8x32xf32>,
    return
  }
  func.func @transform_0(%arg0: i32) -> (i32, i32) {
    %c0_i32 = arith.constant 0 : i32
    %c0_i32_0 = arith.constant 0 : i32
    return %arg0, %c0_i32 : i32, i32
  }
  func.func @transform_1(%arg0: i32) -> (i32, i32) {
    %c0_i32 = arith.constant 0 : i32
    %c0_i32_0 = arith.constant 0 : i32
    return %arg0, %c0_i32 : i32, i32
  }
  func.func @transform_2(%arg0: i32) -> (i32, i32) {
    %c0_i32 = arith.constant 0 : i32
    %c0_i32_0 = arith.constant 0 : i32
    return %arg0, %c0_i32 : i32, i32
  }
}

</mosaic_0001>

<llo_original>
// kernel: tpu_custom_call.1
$region0: #{tpu_custom_call.1}
  #allocation0 [shape = 'u32[]', space=smem, size = 0x4, offset = 0x4, fixed_abs, tag = 'smem constant byte address 0x4 - core index']
  #allocation1 [shape = 'u32[144,128]{1,0:T(1,128)}', space=vmem, size = 0x12000, scoped, tag = 'internal scratch']
  %s0 = inlined_call_operand.hbm [shape: f32[8,64], index: 0, kind: input, shape index: {}]
  %s1 = inlined_call_operand.hbm [shape: f32[8,32], index: 1, kind: input, shape index: {}]
  %s2 = inlined_call_operand.hbm [shape: f32[8,64], index: 2, kind: output, shape index: {}]
  %s3 = sld [smem:[#allocation0]]
  $region26: #{tpu_custom_call.1} parent=0
    _
  %s5 = ssub.s32 1, %s3
  %s6 = scalar_select 0, %s5, %s3
  $region1: #{tpu_custom_call.1} parent=0
    #allocation2 [shape = 'u8[4096]{0}', space=vmem, size = 0x1000, scoped, tag = 'input window, operand 0, single buffered']
    #allocation3 [shape = 's32[1]{0}', space=sflag, size = 0x4, scoped, tag = 'scoped memory for tpu_custom_call.1']
    #allocation4 [shape = 's32[1]{0}', space=sflag, size = 0x4, scoped, tag = 'scoped memory for tpu_custom_call.1']
    #allocation5 [shape = 'u8[4096]{0}', space=vmem, size = 0x1000, scoped, tag = 'input window, operand 1, single buffered']
    #allocation6 [shape = 's32[1]{0}', space=sflag, size = 0x4, scoped, tag = 'scoped memory for tpu_custom_call.1']
    #allocation7 [shape = 'u8[4096]{0}', space=vmem, size = 0x1000, scoped, tag = 'output window, operand 0, single buffered']
    %7 = vsyncpa [#allocation3], 0
    %8 = vsyncpa [#allocation6], 0
    %9 = vsyncpa [#allocation4], 0
    // Predicated region
    $region2: #{tpu_custom_call.1} parent=1 // pred_check
      _
    $region3: #{tpu_custom_call.1} parent=1 // pred_check_branch
      %11 = sbr.rel (0) target = $region5
    $region4: #{tpu_custom_call.1} parent=1 // pred_region
      %s13 = ssub.s32 128, 128
      %14 = vsyncadd [#allocation3], %s13
      %s16 = sshll.u32 [#allocation2], 4
      %s17 = int_to_ptr.vmem [resolvable:$true] %s16
      %19 = dma.hbm_to_vmem [thread:$0]  %s0, 128, %s17, [#allocation3]
    $region5: #{tpu_custom_call.1} parent=1 // pred_fallthru
      _
    // Predicated region
    $region6: #{tpu_custom_call.1} parent=1 // pred_check
      _
    $region7: #{tpu_custom_call.1} parent=1 // pred_check_branch
      %21 = sbr.rel (0) target = $region9
    $region8: #{tpu_custom_call.1} parent=1 // pred_region
      %s23 = ssub.s32 128, 128
      %24 = vsyncadd [#allocation6], %s23
      %s26 = sshll.u32 [#allocation5], 4
      %s27 = int_to_ptr.vmem [resolvable:$true] %s26
      %29 = dma.hbm_to_vmem [thread:$0]  %s1, 128, %s27, [#allocation6]
    $region9: #{tpu_custom_call.1} parent=1 // pred_fallthru
      _
    // Predicated region
    $region10: #{tpu_custom_call.1} parent=1 // pred_check
      _
    $region11: #{tpu_custom_call.1} parent=1 // pred_check_branch
      %31 = sbr.rel (0) target = $region13
    $region12: #{tpu_custom_call.1} parent=1 // pred_region
      %32 = dma.done [#allocation3], 128
    $region13: #{tpu_custom_call.1} parent=1 // pred_fallthru
      _
    // Predicated region
    $region14: #{tpu_custom_call.1} parent=1 // pred_check
      _
    $region15: #{tpu_custom_call.1} parent=1 // pred_check_branch
      %34 = sbr.rel (0) target = $region17
    $region16: #{tpu_custom_call.1} parent=1 // pred_region
      %35 = dma.done [#allocation6], 128
    $region17: #{tpu_custom_call.1} parent=1 // pred_fallthru
      _
    %v36 = vld [vmem:[#allocation5] sm:$0xff]
    %v37 = vld [vmem:[#allocation2] sm:$0xff]
    %v38 = vadd.f32 %v37, %v36
    %vm39 = vcmask 261120
    %40 = vst.msk [vmem:[#allocation7] sm:$0xff] %vm39, %v38
    %v41 = vld [vmem:[#allocation2] sm:$0xff]
    %43 = vrot.lane.b32.xlu0 %v36, 32
    %v44 = vpop.permute.xlu0 %43
    %v46 = vadd.f32 %v41, %v44
    %vm47 = vcmask 523520
    %48 = vst.msk [vmem:[#allocation7] sm:$0xff] %vm47, %v46
    // Predicated region
    $region18: #{tpu_custom_call.1} parent=1 // pred_check
      _
    $region19: #{tpu_custom_call.1} parent=1 // pred_check_branch
      %50 = sbr.rel (0) target = $region21
    $region20: #{tpu_custom_call.1} parent=1 // pred_region
      %s52 = ssub.s32 128, 128
      %53 = vsyncadd [#allocation4], %s52
      %s55 = sshll.u32 [#allocation7], 4
      %s56 = int_to_ptr.vmem [resolvable:$true] %s55
      %58 = dma.vmem_to_hbm [thread:$0]  %s56, 128, %s2, [#allocation4]
    $region21: #{tpu_custom_call.1} parent=1 // pred_fallthru
      _
    // Predicated region
    $region22: #{tpu_custom_call.1} parent=1 // pred_check
      _
    $region23: #{tpu_custom_call.1} parent=1 // pred_check_branch
      %60 = sbr.rel (0) target = $region25
    $region24: #{tpu_custom_call.1} parent=1 // pred_region
      %61 = dma.done [#allocation4], 128
    $region25: #{tpu_custom_call.1} parent=1 // pred_fallthru
      _
    %62 = vsyncpa [#allocation3], 1
    %63 = vsyncpa [#allocation6], 1
    %64 = vsyncpa [#allocation4], 1

</llo_original>
